<compile_context>
chip_gen: v6e
topology: v6e:2x2x1
jax: 0.10.0
libtpu: 0.0.40
codegen_flags: <defaults>
</compile_context>

<pallas_src>
import jax
import jax.numpy as jnp
from jax.experimental import pallas as pl
from jax.experimental.pallas import tpu as pltpu

LANE = 128      # lane width: pad hidden/matmul feature dims to multiples of this
SUBLANE = 8     # sublane width: batch tiles are multiples of this
TB_MAX = 1024   # target batch tile (per-step overhead amortized; << VMEM)


def _round_up(x, m):
    return (x + m - 1) // m * m


def _choose_batch_tile(B):
    """Batch tile: big (<=1024) to amortize ~0.35us/step overhead, but small
    enough that the grid has >=2 steps for v7x's 2 TensorCores when B allows."""
    B8 = _round_up(B, SUBLANE)
    if B8 <= 2 * SUBLANE:
        return B8                                   # tiny batch: one exact tile
    return min(TB_MAX, _round_up((B8 + 1) // 2, SUBLANE))


def _mlp_kernel(s_ref, a_ref, w1s_ref, w1a_ref, b1_ref,
                w2_ref, b2_ref, w3_ref, b3_ref, mean_ref, logstd_ref):
    # fc1 (+ folded concat) + relu : x @ W1 == state @ W1[:S] + action @ W1[S:]
    h1 = jnp.dot(s_ref[...], w1s_ref[...], preferred_element_type=jnp.float32)
    h1 += jnp.dot(a_ref[...], w1a_ref[...], preferred_element_type=jnp.float32)
    h1 = jnp.maximum(h1 + b1_ref[...], 0.0).astype(jnp.bfloat16)
    # fc2 + relu
    h2 = jnp.dot(h1, w2_ref[...], preferred_element_type=jnp.float32)
    h2 = jnp.maximum(h2 + b2_ref[...], 0.0).astype(jnp.bfloat16)
    # fc3 (no activation); only the first 2*state_dim columns are real
    y = jnp.dot(h2, w3_ref[...], preferred_element_type=jnp.float32)
    y = y + b3_ref[...]
    sd = mean_ref.shape[1]
    mean_ref[...] = y[:, :sd].astype(mean_ref.dtype)          # torch.chunk half 0
    logstd_ref[...] = y[:, sd:2 * sd].astype(logstd_ref.dtype)  # torch.chunk half 1


def init_params(key, state_dim, action_dim, hidden_dims):
    """Unpadded f32 params matching nn.Linear (weights stored [in, out])."""
    in_dim = state_dim + action_dim
    dims = [in_dim, hidden_dims[0], hidden_dims[1], state_dim * 2]
    params = []
    for i in range(3):
        key, kw, kb = jax.random.split(key, 3)
        bound = 1.0 / jnp.sqrt(dims[i])
        w = jax.random.uniform(kw, (dims[i], dims[i + 1]), jnp.float32, -bound, bound)
        b = jax.random.uniform(kb, (1, dims[i + 1]), jnp.float32, -bound, bound)
        params += [w, b]
    return tuple(params)


def prepare_kernel_params(params, state_dim, action_dim):
    """Split W1 into state/action blocks, zero-pad feature dims to 128, and
    cast weights to bf16 (biases stay f32; accumulation in-kernel is f32).

    Zero padding is exact: padded hidden units get weight-col 0 / bias 0, so
    ReLU leaves them at 0, and padded weight rows contribute nothing downstream.
    """
    w1, b1, w2, b2, w3, b3 = params
    h1, h2, dout = w1.shape[1], w2.shape[1], w3.shape[1]
    H1, H2, DOUT = _round_up(h1, LANE), _round_up(h2, LANE), _round_up(dout, LANE)

    w1_s = jnp.zeros((state_dim, H1), jnp.float32).at[:, :h1].set(w1[:state_dim])
    w1_a = jnp.zeros((action_dim, H1), jnp.float32).at[:, :h1].set(w1[state_dim:])
    b1_p = jnp.zeros((1, H1), jnp.float32).at[:, :h1].set(b1)
    w2_p = jnp.zeros((H1, H2), jnp.float32).at[:h1, :h2].set(w2)
    b2_p = jnp.zeros((1, H2), jnp.float32).at[:, :h2].set(b2)
    w3_p = jnp.zeros((H2, DOUT), jnp.float32).at[:h2, :dout].set(w3)
    b3_p = jnp.zeros((1, DOUT), jnp.float32).at[:, :dout].set(b3)

    bf = jnp.bfloat16
    return (w1_s.astype(bf), w1_a.astype(bf), b1_p,
            w2_p.astype(bf), b2_p, w3_p.astype(bf), b3_p), dout


def transition_model_forward(state, action, kernel_params, out_dim):
    """state: [B, state_dim], action: [B, action_dim] -> (mean, log_std)."""
    w1s, w1a, b1, w2, b2, w3, b3 = kernel_params
    B = state.shape[0]
    state_dim = out_dim // 2

    # bf16 operands (halves input DMA); f32 accumulation inside the kernel.
    state = state.astype(jnp.bfloat16)
    action = action.astype(jnp.bfloat16)

    TB = _choose_batch_tile(B)
    B_pad = _round_up(B, TB)
    if B_pad != B:
        pad = ((0, B_pad - B), (0, 0))
        state = jnp.pad(state, pad)
        action = jnp.pad(action, pad)

    grid = (B_pad // TB,)
    resident = lambda arr: pl.BlockSpec(arr.shape, lambda i: (0, 0))  # stays in VMEM

    mean, log_std = pl.pallas_call(
        _mlp_kernel,
        out_shape=(jax.ShapeDtypeStruct((B_pad, state_dim), jnp.float32),
                   jax.ShapeDtypeStruct((B_pad, state_dim), jnp.float32)),
        grid_spec=pltpu.PrefetchScalarGridSpec(
            num_scalar_prefetch=0,
            grid=grid,
            in_specs=[
                pl.BlockSpec((TB, state.shape[1]), lambda i: (i, 0)),   # state tile
                pl.BlockSpec((TB, action.shape[1]), lambda i: (i, 0)),  # action tile
                resident(w1s), resident(w1a), resident(b1),
                resident(w2), resident(b2),
                resident(w3), resident(b3),
            ],
            out_specs=(pl.BlockSpec((TB, state_dim), lambda i: (i, 0)),   # mean
                       pl.BlockSpec((TB, state_dim), lambda i: (i, 0))),  # log_std
        ),
        compiler_params=pltpu.CompilerParams(
            dimension_semantics=("parallel",),
            vmem_limit_bytes=32 * 1024 * 1024),      # cheap insurance (v5e default 16MiB)
    )(state, action, w1s, w1a, b1, w2, b2, w3, b3)

    if B_pad != B:                                    # drop padded rows (if any)
        mean, log_std = mean[:B], log_std[:B]
    return mean, log_std


def reference_forward(state, action, params):
    """Pure-JAX f32 reference of the PyTorch forward pass (unpadded params)."""
    w1, b1, w2, b2, w3, b3 = params
    x = jnp.concatenate([state, action], axis=-1)
    x = jax.nn.relu(x @ w1 + b1)
    x = jax.nn.relu(x @ w2 + b2)
    x = x @ w3 + b3
    return jnp.split(x, 2, axis=-1)


if __name__ == "__main__":
    key = jax.random.PRNGKey(0)
    state_dim, action_dim = 16, 8
    hidden_dims = (32, 32)

    k1, k2, k3 = jax.random.split(key, 3)
    params = init_params(k3, state_dim, action_dim, hidden_dims)
    kernel_params, out_dim = prepare_kernel_params(params, state_dim, action_dim)

    # Small batch (single tile) + a multi-tile batch to exercise the grid path.
    for batch in (8, 48):
        ks, ka = jax.random.split(jax.random.fold_in(k1, batch))
        state = jax.random.normal(ks, (batch, state_dim), jnp.float32)
        action = jax.random.normal(ka, (batch, action_dim), jnp.float32)

        mean, log_std = transition_model_forward(state, action, kernel_params, out_dim)
        jax.block_until_ready((mean, log_std))

        mean_ref, log_std_ref = reference_forward(state, action, params)
        assert mean.shape == (batch, state_dim) and log_std.shape == (batch, state_dim)
        # bf16 operands / f32 accumulation vs. f32 reference -> loosened tolerance.
        assert jnp.allclose(mean, mean_ref, atol=3e-2, rtol=3e-2)
        assert jnp.allclose(log_std, log_std_ref, atol=3e-2, rtol=3e-2)

    print("KERNEL_OK")
</pallas_src>

<mosaic_0001>
module attributes {stable_mosaic.version = 11 : i64} {
  func.func @_mlp_kernel(%arg0: i32, %arg1: memref<8x16xbf16, #tpu.memory_space<vmem>>, %arg2: memref<8x8xbf16, #tpu.memory_space<vmem>>, %arg3: memref<16x128xbf16, #tpu.memory_space<vmem>>, %arg4: memref<8x128xbf16, #tpu.memory_space<vmem>>, %arg5: memref<1x128xf32, #tpu.memory_space<vmem>>, %arg6: memref<128x128xbf16, #tpu.memory_space<vmem>>, %arg7: memref<1x128xf32, #tpu.memory_space<vmem>>, %arg8: memref<128x128xbf16, #tpu.memory_space<vmem>>, %arg9: memref<1x128xf32, #tpu.memory_space<vmem>>, %arg10: memref<8x16xf32, #tpu.memory_space<vmem>>, %arg11: memref<8x16xf32, #tpu.memory_space<vmem>>) attributes {dimension_semantics = [#tpu.dimension_semantics<parallel>], iteration_bounds = array<i64: 1>, scalar_prefetch = 0 : i64, scratch_operands = 0 : i64, tpu.core_type = #tpu.core_type<tc>, window_params = [{transform_indices = @transform_0, window_bounds = array<i64: 8, 16>}, {transform_indices = @transform_1, window_bounds = array<i64: 8, 8>}, {pipeline_mode = #tpu.pipeline_mode<synchronous>, transform_indices = @transform_2, window_bounds = array<i64: 16, 128>}, {pipeline_mode = #tpu.pipeline_mode<synchronous>, transform_indices = @transform_3, window_bounds = array<i64: 8, 128>}, {pipeline_mode = #tpu.pipeline_mode<synchronous>, transform_indices = @transform_4, window_bounds = array<i64: 1, 128>}, {pipeline_mode = #tpu.pipeline_mode<synchronous>, transform_indices = @transform_5, window_bounds = array<i64: 128, 128>}, {pipeline_mode = #tpu.pipeline_mode<synchronous>, transform_indices = @transform_6, window_bounds = array<i64: 1, 128>}, {pipeline_mode = #tpu.pipeline_mode<synchronous>, transform_indices = @transform_7, window_bounds = array<i64: 128, 128>}, {pipeline_mode = #tpu.pipeline_mode<synchronous>, transform_indices = @transform_8, window_bounds = array<i64: 1, 128>}, {transform_indices = @transform_9, window_bounds = array<i64: 8, 16>}, {transform_indices = @transform_10, window_bounds = array<i64: 8, 16>}]} {
    %c0 = arith.constant 0 : index
    %c0_0 = arith.constant 0 : index
    %0 = vector.load %arg1[%c0, %c0_0] : memref<8x16xbf16, #tpu.memory_space<vmem>>, vector<8x16xbf16>
    %c0_1 = arith.constant 0 : index
    %c0_2 = arith.constant 0 : index
    %1 = vector.load %arg3[%c0_1, %c0_2] : memref<16x128xbf16, #tpu.memory_space<vmem>>, vector<16x128xbf16>
    %cst = arith.constant dense<0.000000e+00> : vector<8x128xf32>
    %2 = tpu.matmul %0, %1, %cst {dimension_numbers = #tpu.dot_dimension_numbers<[1], [0], [0], [1], [0, 0, 1, 1], [], []>} : vector<8x16xbf16>, vector<16x128xbf16>, vector<8x128xf32> -> vector<8x128xf32>
    %c0_3 = arith.constant 0 : index
    %c0_4 = arith.constant 0 : index
    %3 = vector.load %arg2[%c0_3, %c0_4] : memref<8x8xbf16, #tpu.memory_space<vmem>>, vector<8x8xbf16>
    %c0_5 = arith.constant 0 : index
    %c0_6 = arith.constant 0 : index
    %4 = vector.load %arg4[%c0_5, %c0_6] : memref<8x128xbf16, #tpu.memory_space<vmem>>, vector<8x128xbf16>
    %cst_7 = arith.constant dense<0.000000e+00> : vector<8x128xf32>
    %5 = tpu.matmul %3, %4, %cst_7 {dimension_numbers = #tpu.dot_dimension_numbers<[1], [0], [0], [1], [0, 0, 1, 1], [], []>} : vector<8x8xbf16>, vector<8x128xbf16>, vector<8x128xf32> -> vector<8x128xf32>
    %6 = arith.addf %2, %5 : vector<8x128xf32>
    %c0_8 = arith.constant 0 : index
    %c0_9 = arith.constant 0 : index
    %7 = vector.load %arg5[%c0_8, %c0_9] : memref<1x128xf32, #tpu.memory_space<vmem>>, vector<1x128xf32>
    %8 = vector.broadcast %7 : vector<1x128xf32> to vector<8x128xf32>
    %9 = arith.addf %6, %8 : vector<8x128xf32>
    %cst_10 = arith.constant 0.000000e+00 : f32
    %10 = vector.broadcast %cst_10 : f32 to vector<8x128xf32>
    %11 = arith.maximumf %9, %10 : vector<8x128xf32>
    %12 = arith.truncf %11 : vector<8x128xf32> to vector<8x128xbf16>
    %c0_11 = arith.constant 0 : index
    %c0_12 = arith.constant 0 : index
    %13 = vector.load %arg6[%c0_11, %c0_12] : memref<128x128xbf16, #tpu.memory_space<vmem>>, vector<128x128xbf16>
    %cst_13 = arith.constant dense<0.000000e+00> : vector<8x128xf32>
    %14 = tpu.matmul %12, %13, %cst_13 {dimension_numbers = #tpu.dot_dimension_numbers<[1], [0], [0], [1], [0, 0, 1, 1], [], []>} : vector<8x128xbf16>, vector<128x128xbf16>, vector<8x128xf32> -> vector<8x128xf32>
    %c0_14 = arith.constant 0 : index
    %c0_15 = arith.constant 0 : index
    %15 = vector.load %arg7[%c0_14, %c0_15] : memref<1x128xf32, #tpu.memory_space<vmem>>, vector<1x128xf32>
    %16 = vector.broadcast %15 : vector<1x128xf32> to vector<8x128xf32>
    %17 = arith.addf %14, %16 : vector<8x128xf32>
    %cst_16 = arith.constant 0.000000e+00 : f32
    %18 = vector.broadcast %cst_16 : f32 to vector<8x128xf32>
    %19 = arith.maximumf %17, %18 : vector<8x128xf32>
    %20 = arith.truncf %19 : vector<8x128xf32> to vector<8x128xbf16>
    %c0_17 = arith.constant 0 : index
    %c0_18 = arith.constant 0 : index
    %21 = vector.load %arg8[%c0_17, %c0_18] : memref<128x128xbf16, #tpu.memory_space<vmem>>, vector<128x128xbf16>
    %cst_19 = arith.constant dense<0.000000e+00> : vector<8x128xf32>
    %22 = tpu.matmul %20, %21, %cst_19 {dimension_numbers = #tpu.dot_dimension_numbers<[1], [0], [0], [1], [0, 0, 1, 1], [], []>} : vector<8x128xbf16>, vector<128x128xbf16>, vector<8x128xf32> -> vector<8x128xf32>
    %c0_20 = arith.constant 0 : index
    %c0_21 = arith.constant 0 : index
    %23 = vector.load %arg9[%c0_20, %c0_21] : memref<1x128xf32, #tpu.memory_space<vmem>>, vector<1x128xf32>
    %24 = vector.broadcast %23 : vector<1x128xf32> to vector<8x128xf32>
    %25 = arith.addf %22, %24 : vector<8x128xf32>
    %26 = vector.extract_strided_slice %25 {offsets = [0, 0], sizes = [8, 16], strides = [1, 1]} : vector<8x128xf32> to vector<8x16xf32>
    %c0_22 = arith.constant 0 : index
    %c0_23 = arith.constant 0 : index
    %27 = vector.load %arg10[%c0_22, %c0_23] : memref<8x16xf32, #tpu.memory_space<vmem>>, vector<8x16xf32>
    tpu.vector_store %arg10[%c0_22, %c0_23], %26 {strides = array<i32>} : memref<8x16xf32, #tpu.memory_space<vmem>>, vector<8x16xf32>,
    %28 = vector.extract_strided_slice %25 {offsets = [0, 16], sizes = [8, 16], strides = [1, 1]} : vector<8x128xf32> to vector<8x16xf32>
    %c0_24 = arith.constant 0 : index
    %c0_25 = arith.constant 0 : index
    %29 = vector.load %arg11[%c0_24, %c0_25] : memref<8x16xf32, #tpu.memory_space<vmem>>, vector<8x16xf32>
    tpu.vector_store %arg11[%c0_24, %c0_25], %28 {strides = array<i32>} : memref<8x16xf32, #tpu.memory_space<vmem>>, vector<8x16xf32>,
    return
  }
  func.func @transform_0(%arg0: i32) -> (i32, i32) {
    %c0_i32 = arith.constant 0 : i32
    %c0_i32_0 = arith.constant 0 : i32
    return %arg0, %c0_i32 : i32, i32
  }
  func.func @transform_1(%arg0: i32) -> (i32, i32) {
    %c0_i32 = arith.constant 0 : i32
    %c0_i32_0 = arith.constant 0 : i32
    return %arg0, %c0_i32 : i32, i32
  }
  func.func @transform_2(%arg0: i32) -> (i32, i32) {
    %c0_i32 = arith.constant 0 : i32
    %c0_i32_0 = arith.constant 0 : i32
    %c0_i32_1 = arith.constant 0 : i32
    return %c0_i32, %c0_i32_0 : i32, i32
  }
  func.func @transform_3(%arg0: i32) -> (i32, i32) {
    %c0_i32 = arith.constant 0 : i32
    %c0_i32_0 = arith.constant 0 : i32
    %c0_i32_1 = arith.constant 0 : i32
    return %c0_i32, %c0_i32_0 : i32, i32
  }
  func.func @transform_4(%arg0: i32) -> (i32, i32) {
    %c0_i32 = arith.constant 0 : i32
    %c0_i32_0 = arith.constant 0 : i32
    %c0_i32_1 = arith.constant 0 : i32
    return %c0_i32, %c0_i32_0 : i32, i32
  }
  func.func @transform_5(%arg0: i32) -> (i32, i32) {
    %c0_i32 = arith.constant 0 : i32
    %c0_i32_0 = arith.constant 0 : i32
    %c0_i32_1 = arith.constant 0 : i32
    return %c0_i32, %c0_i32_0 : i32, i32
  }
  func.func @transform_6(%arg0: i32) -> (i32, i32) {
    %c0_i32 = arith.constant 0 : i32
    %c0_i32_0 = arith.constant 0 : i32
    %c0_i32_1 = arith.constant 0 : i32
    return %c0_i32, %c0_i32_0 : i32, i32
  }
  func.func @transform_7(%arg0: i32) -> (i32, i32) {
    %c0_i32 = arith.constant 0 : i32
    %c0_i32_0 = arith.constant 0 : i32
    %c0_i32_1 = arith.constant 0 : i32
    return %c0_i32, %c0_i32_0 : i32, i32
  }
  func.func @transform_8(%arg0: i32) -> (i32, i32) {
    %c0_i32 = arith.constant 0 : i32
    %c0_i32_0 = arith.constant 0 : i32
    %c0_i32_1 = arith.constant 0 : i32
    return %c0_i32, %c0_i32_0 : i32, i32
  }
  func.func @transform_9(%arg0: i32) -> (i32, i32) {
    %c0_i32 = arith.constant 0 : i32
    %c0_i32_0 = arith.constant 0 : i32
    return %arg0, %c0_i32 : i32, i32
  }
  func.func @transform_10(%arg0: i32) -> (i32, i32) {
    %c0_i32 = arith.constant 0 : i32
    %c0_i32_0 = arith.constant 0 : i32
    return %arg0, %c0_i32 : i32, i32
  }
}

</mosaic_0001>

<llo_original>
// kernel: tpu_custom_call.1
$region0: #{tpu_custom_call.1}
  #allocation0 [shape = 'u32[]', space=smem, size = 0x4, offset = 0x4, fixed_abs, tag = 'smem constant byte address 0x4 - core index']
  #allocation1 [shape = 'u32[144,128]{1,0:T(1,128)}', space=vmem, size = 0x12000, scoped, tag = 'internal scratch']
  %s0 = inlined_call_operand.hbm [shape: bf16[8,16], index: 0, kind: input, shape index: {}]
  %s1 = inlined_call_operand.hbm [shape: bf16[8,8], index: 1, kind: input, shape index: {}]
  %s2 = inlined_call_operand.hbm [shape: bf16[16,128], index: 2, kind: input, shape index: {}]
  %s3 = inlined_call_operand.vmem [shape: bf16[8,128], index: 3, kind: input, shape index: {}]
  %s4 = inlined_call_operand.vmem [shape: f32[1,128], index: 4, kind: input, shape index: {}]
  %s5 = inlined_call_operand.hbm [shape: bf16[128,128], index: 5, kind: input, shape index: {}]
  %s6 = inlined_call_operand.vmem [shape: f32[1,128], index: 6, kind: input, shape index: {}]
  %s7 = inlined_call_operand.hbm [shape: bf16[128,128], index: 7, kind: input, shape index: {}]
  %s8 = inlined_call_operand.vmem [shape: f32[1,128], index: 8, kind: input, shape index: {}]
  %s9 = inlined_call_operand.hbm [shape: f32[8,16], index: 9, kind: output, shape index: {0}]
  %s10 = inlined_call_operand.hbm [shape: f32[8,16], index: 10, kind: output, shape index: {1}]
  %11 = xla_tuple %s9, %s10
  %s12 = sld [smem:[#allocation0]]
  $region74: #{tpu_custom_call.1} parent=0
    _
  %s14 = ssub.s32 1, %s12
  %s15 = scalar_select 0, %s14, %s12
  $region1: #{tpu_custom_call.1} parent=0
    #allocation2 [shape = 'u8[2048]{0}', space=vmem, size = 0x800, scoped, tag = 'input window, operand 0, single buffered']
    #allocation3 [shape = 's32[1]{0}', space=sflag, size = 0x4, scoped, tag = 'scoped memory for tpu_custom_call.1']
    #allocation4 [shape = 's32[1]{0}', space=sflag, size = 0x4, scoped, tag = 'scoped memory for tpu_custom_call.1']
    #allocation5 [shape = 'u8[2048]{0}', space=vmem, size = 0x800, scoped, tag = 'input window, operand 1, single buffered']
    #allocation6 [shape = 's32[1]{0}', space=sflag, size = 0x4, scoped, tag = 'scoped memory for tpu_custom_call.1']
    #allocation7 [shape = 'u8[4096]{0}', space=vmem, size = 0x1000, scoped, tag = 'input window, operand 2, single buffered']
    #allocation8 [shape = 'u8[32768]{0}', space=vmem, size = 0x8000, scoped, tag = 'input window, operand 5, single buffered']
    #allocation9 [shape = 's32[1]{0}', space=sflag, size = 0x4, scoped, tag = 'scoped memory for tpu_custom_call.1']
    #allocation10 [shape = 'u8[32768]{0}', space=vmem, size = 0x8000, scoped, tag = 'input window, operand 7, single buffered']
    #allocation11 [shape = 'u8[4096]{0}', space=vmem, size = 0x1000, scoped, tag = 'output window, operand 0, single buffered']
    #allocation12 [shape = 'u8[4096]{0}', space=vmem, size = 0x1000, scoped, tag = 'output window, operand 1, single buffered']
    #allocation13 [shape = 's32[1]{0}', space=sflag, size = 0x4, scoped, tag = 'scoped memory for tpu_custom_call.1']
    %16 = vsyncpa [#allocation3], 0
    %17 = vsyncpa [#allocation6], 0
    %18 = vsyncpa [#allocation9], 0
    %19 = vsyncpa [#allocation4], 0
    %20 = vsyncpa [#allocation13], 0
    // Predicated region
    $region2: #{tpu_custom_call.1} parent=1 // pred_check
      _
    $region3: #{tpu_custom_call.1} parent=1 // pred_check_branch
      %22 = sbr.rel (0) target = $region5
    $region4: #{tpu_custom_call.1} parent=1 // pred_region
      %s24 = ssub.s32 64, 64
      %25 = vsyncadd [#allocation3], %s24
      %s27 = sshll.u32 [#allocation2], 4
      %s28 = int_to_ptr.vmem [resolvable:$true] %s27
      %30 = dma.hbm_to_vmem [thread:$0]  %s0, 64, %s28, [#allocation3]
    $region5: #{tpu_custom_call.1} parent=1 // pred_fallthru
      _
    // Predicated region
    $region6: #{tpu_custom_call.1} parent=1 // pred_check
      _
    $region7: #{tpu_custom_call.1} parent=1 // pred_check_branch
      %32 = sbr.rel (0) target = $region9
    $region8: #{tpu_custom_call.1} parent=1 // pred_region
      %s34 = ssub.s32 64, 64
      %35 = vsyncadd [#allocation6], %s34
      %s37 = sshll.u32 [#allocation5], 4
      %s38 = int_to_ptr.vmem [resolvable:$true] %s37
      %40 = dma.hbm_to_vmem [thread:$0]  %s1, 64, %s38, [#allocation6]
    $region9: #{tpu_custom_call.1} parent=1 // pred_fallthru
      _
    // Predicated region
    $region10: #{tpu_custom_call.1} parent=1 // pred_check
      _
    $region11: #{tpu_custom_call.1} parent=1 // pred_check_branch
      %42 = sbr.rel (0) target = $region13
    $region12: #{tpu_custom_call.1} parent=1 // pred_region
      %s44 = ssub.s32 128, 128
      %45 = vsyncadd [#allocation6], %s44
      %s46 = sshll.u32 [#allocation7], 4
      %s47 = int_to_ptr.vmem [resolvable:$true] %s46
      %52 = dma.hbm_to_vmem [thread:$0]  %s2, 128, %s47, [#allocation6], 64, 64, 4
    $region13: #{tpu_custom_call.1} parent=1 // pred_fallthru
      _
    // Predicated region
    $region14: #{tpu_custom_call.1} parent=1 // pred_check
      _
    $region15: #{tpu_custom_call.1} parent=1 // pred_check_branch
      %54 = sbr.rel (0) target = $region17
    $region16: #{tpu_custom_call.1} parent=1 // pred_region
      _
    $region17: #{tpu_custom_call.1} parent=1 // pred_fallthru
      _
    // Predicated region
    $region18: #{tpu_custom_call.1} parent=1 // pred_check
      _
    $region19: #{tpu_custom_call.1} parent=1 // pred_check_branch
      %56 = sbr.rel (0) target = $region21
    $region20: #{tpu_custom_call.1} parent=1 // pred_region
      _
    $region21: #{tpu_custom_call.1} parent=1 // pred_fallthru
      _
    // Predicated region
    $region22: #{tpu_custom_call.1} parent=1 // pred_check
      _
    $region23: #{tpu_custom_call.1} parent=1 // pred_check_branch
      %58 = sbr.rel (0) target = $region25
    $region24: #{tpu_custom_call.1} parent=1 // pred_region
      %s60 = ssub.s32 1024, 1024
      %61 = vsyncadd [#allocation9], %s60
      %s62 = sshll.u32 [#allocation8], 4
      %s63 = int_to_ptr.vmem [resolvable:$true] %s62
      %68 = dma.hbm_to_vmem [thread:$0]  %s5, 1024, %s63, [#allocation9], 64, 64, 4
    $region25: #{tpu_custom_call.1} parent=1 // pred_fallthru
      _
    // Predicated region
    $region26: #{tpu_custom_call.1} parent=1 // pred_check
      _
    $region27: #{tpu_custom_call.1} parent=1 // pred_check_branch
      %70 = sbr.rel (0) target = $region29
    $region28: #{tpu_custom_call.1} parent=1 // pred_region
      _
    $region29: #{tpu_custom_call.1} parent=1 // pred_fallthru
      _
    // Predicated region
    $region30: #{tpu_custom_call.1} parent=1 // pred_check
      _
    $region31: #{tpu_custom_call.1} parent=1 // pred_check_branch
      %72 = sbr.rel (0) target = $region33
    $region32: #{tpu_custom_call.1} parent=1 // pred_region
      %s74 = ssub.s32 1024, 1024
      %75 = vsyncadd [#allocation9], %s74
      %s76 = sshll.u32 [#allocation10], 4
      %s77 = int_to_ptr.vmem [resolvable:$true] %s76
      %82 = dma.hbm_to_vmem [thread:$0]  %s7, 1024, %s77, [#allocation9], 64, 64, 4
    $region33: #{tpu_custom_call.1} parent=1 // pred_fallthru
      _
    // Predicated region
    $region34: #{tpu_custom_call.1} parent=1 // pred_check
      _
    $region35: #{tpu_custom_call.1} parent=1 // pred_check_branch
      %84 = sbr.rel (0) target = $region37
    $region36: #{tpu_custom_call.1} parent=1 // pred_region
      _
    $region37: #{tpu_custom_call.1} parent=1 // pred_fallthru
      _
    // Predicated region
    $region38: #{tpu_custom_call.1} parent=1 // pred_check
      _
    $region39: #{tpu_custom_call.1} parent=1 // pred_check_branch
      %86 = sbr.rel (0) target = $region41
    $region40: #{tpu_custom_call.1} parent=1 // pred_region
      %87 = dma.done [#allocation3], 64
    $region41: #{tpu_custom_call.1} parent=1 // pred_fallthru
      _
    // Predicated region
    $region42: #{tpu_custom_call.1} parent=1 // pred_check
      _
    $region43: #{tpu_custom_call.1} parent=1 // pred_check_branch
      %89 = sbr.rel (0) target = $region45
    $region44: #{tpu_custom_call.1} parent=1 // pred_region
      %90 = dma.done [#allocation6], 64
    $region45: #{tpu_custom_call.1} parent=1 // pred_fallthru
      _
    // Predicated region
    $region46: #{tpu_custom_call.1} parent=1 // pred_check
      _
    $region47: #{tpu_custom_call.1} parent=1 // pred_check_branch
      %92 = sbr.rel (0) target = $region49
    $region48: #{tpu_custom_call.1} parent=1 // pred_region
      %93 = dma.done [#allocation6], 128
    $region49: #{tpu_custom_call.1} parent=1 // pred_fallthru
      _
    // Predicated region
    $region50: #{tpu_custom_call.1} parent=1 // pred_check
      _
    $region51: #{tpu_custom_call.1} parent=1 // pred_check_branch
      %95 = sbr.rel (0) target = $region53
    $region52: #{tpu_custom_call.1} parent=1 // pred_region
      %96 = dma.done [#allocation9], 1024
    $region53: #{tpu_custom_call.1} parent=1 // pred_fallthru
      _
    // Predicated region
    $region54: #{tpu_custom_call.1} parent=1 // pred_check
      _
    $region55: #{tpu_custom_call.1} parent=1 // pred_check_branch
      %98 = sbr.rel (0) target = $region57
    $region56: #{tpu_custom_call.1} parent=1 // pred_region
      %99 = dma.done [#allocation9], 1024
    $region57: #{tpu_custom_call.1} parent=1 // pred_fallthru
      _
    %v101 = vld [vmem:[#allocation2] sm:$0xf]
    %v102 = vld [vmem:[#allocation7] sm:$0xf]
    %v103 = vld [vmem:[#allocation7 + $0x4] sm:$0xf]
    %v104 = vld [vmem:[#allocation5] sm:$0xf]
    %v105 = vld [vmem:[%s3] sm:$0xf]
    %vm106 = vcmask 64512
    %v108 = vsel %vm106, %v104, 0
    %vm110 = vcmask 1043456
    %v112 = vsel %vm110, %v105, 0
    %114 = vmatprep.subr.bf16.mxu0 0
    %115 = vmatpush1.bf16.msra.mxu0 0
    %116 = vmatprep.subr.bf16.mxu0 0
    %117 = vmatpush1.bf16.msra.mxu0 0
    %118 = vmatprep.subr.bf16.mxu0 0
    %119 = vmatpush1.bf16.msra.mxu0 0
    %120 = vmatprep.subr.bf16.mxu0 0
    %121 = vmatpush1.bf16.msra.mxu0 0
    %122 = vmatprep.subr.bf16.mxu0 0
    %123 = vmatpush1.bf16.msra.mxu0 0
    %124 = vmatprep.subr.bf16.mxu0 0
    %125 = vmatpush1.bf16.msra.mxu0 0
    %126 = vmatprep.subr.bf16.mxu0 0
    %127 = vmatpush1.bf16.msra.mxu0 0
    %128 = vmatprep.subr.bf16.mxu0 0
    %129 = vmatpush1.bf16.msra.mxu0 %v112
    %130 = vmatprep.subr.bf16.mxu0 0
    %131 = vmatpush2.bf16.msra.mxu0 0
    %132 = vmatprep.subr.bf16.mxu0 0
    %133 = vmatpush2.bf16.msra.mxu0 0
    %134 = vmatprep.subr.bf16.mxu0 0
    %135 = vmatpush2.bf16.msra.mxu0 0
    %136 = vmatprep.subr.bf16.mxu0 0
    %137 = vmatpush2.bf16.msra.mxu0 0
    %138 = vmatprep.subr.bf16.mxu0 0
    %139 = vmatpush2.bf16.msra.mxu0 0
    %140 = vmatprep.subr.bf16.mxu0 0
    %141 = vmatpush2.bf16.msra.mxu0 0
    %142 = vmatprep.subr.bf16.mxu0 0
    %143 = vmatpush2.bf16.msra.mxu0 0
    %144 = vmatprep.subr.bf16.mxu0 0
    %145 = vmatpush2.bf16.msra.mxu0 0
    %146 = vmatprep.mubr.bf16.mxu0 0
    %147 = vmatmul.mubr.bf16.gmra.mxu0 %v108
    %v148 = vpop.f32.mrf.mxu0
    %v149 = vadd.f32 0.0, %v148
    %v150 = vpop.f32.mrf.mxu0
    %v151 = vpop.f32.mrf.mxu0
    %v152 = vpop.f32.mrf.mxu0
    %153 = vdwg.mxu0
    %v156 = vunpack.c.l.b16 %v102
    %v157 = vunpack.c.l.b16 %v103
    %v158 = vpack.c.b16 %v157, %v156
    %vm160 = vcmask 130048
    %v162 = vsel %vm160, %v101, 0
    %164 = vmatprep.subr.bf16.mxu0 0
    %165 = vmatpush1.bf16.msra.mxu0 0
    %166 = vmatprep.subr.bf16.mxu0 0
    %167 = vmatpush1.bf16.msra.mxu0 0
    %168 = vmatprep.subr.bf16.mxu0 0
    %169 = vmatpush1.bf16.msra.mxu0 0
    %170 = vmatprep.subr.bf16.mxu0 0
    %171 = vmatpush1.bf16.msra.mxu0 0
    %172 = vmatprep.subr.bf16.mxu0 0
    %173 = vmatpush1.bf16.msra.mxu0 0
    %174 = vmatprep.subr.bf16.mxu0 0
    %175 = vmatpush1.bf16.msra.mxu0 0
    %176 = vmatprep.subr.bf16.mxu0 0
    %177 = vmatpush1.bf16.msra.mxu0 0
    %178 = vmatprep.subr.bf16.mxu0 0
    %179 = vmatpush1.bf16.msra.mxu0 %v158
    %180 = vmatprep.subr.bf16.mxu0 0
    %181 = vmatpush2.bf16.msra.mxu0 0
    %182 = vmatprep.subr.bf16.mxu0 0
    %183 = vmatpush2.bf16.msra.mxu0 0
    %184 = vmatprep.subr.bf16.mxu0 0
    %185 = vmatpush2.bf16.msra.mxu0 0
    %186 = vmatprep.subr.bf16.mxu0 0
    %187 = vmatpush2.bf16.msra.mxu0 0
    %188 = vmatprep.subr.bf16.mxu0 0
    %189 = vmatpush2.bf16.msra.mxu0 0
    %190 = vmatprep.subr.bf16.mxu0 0
    %191 = vmatpush2.bf16.msra.mxu0 0
    %192 = vmatprep.subr.bf16.mxu0 0
    %193 = vmatpush2.bf16.msra.mxu0 0
    %194 = vmatprep.subr.bf16.mxu0 0
    %195 = vmatpush2.bf16.msra.mxu0 0
    %196 = vmatprep.mubr.bf16.mxu0 0
    %197 = vmatmul.mubr.bf16.gmra.mxu0 %v162
    %v198 = vpop.f32.mrf.mxu0
    %v199 = vadd.f32 %v149, %v198
    %v200 = vpop.f32.mrf.mxu0
    %v201 = vpop.f32.mrf.mxu0
    %v202 = vpop.f32.mrf.mxu0
    %203 = vdwg.mxu0
    %v204 = vld [vmem:[%s4] sm:$0x1]
    %v206 = vlaneseq
    %v207 = vshrl.u32 %v206, 7
    %v208 = vsub.s32 0, %v207
    %v209 = vrot.slane %v204, %v208
    %v211 = vadd.f32 %v199, %v209
    %v212 = vmax.f32 %v211, 0.0
    %v213 = vpack.c.bf16 %v212, %v212
    %v214 = vld [vmem:[#allocation8] sm:$0xf]
    %v215 = vld [vmem:[#allocation8 + $0x4] sm:$0xf]
    %v216 = vld [vmem:[#allocation8 + $0x8] sm:$0xf]
    %v217 = vld [vmem:[#allocation8 + $0xc] sm:$0xf]
    %v218 = vld [vmem:[#allocation8 + $0x10] sm:$0xf]
    %v219 = vld [vmem:[#allocation8 + $0x14] sm:$0xf]
    %v220 = vld [vmem:[#allocation8 + $0x18] sm:$0xf]
    %v221 = vld [vmem:[#allocation8 + $0x1c] sm:$0xf]
    %v222 = vld [vmem:[#allocation8 + $0x20] sm:$0xf]
    %v223 = vld [vmem:[#allocation8 + $0x24] sm:$0xf]
    %v224 = vld [vmem:[#allocation8 + $0x28] sm:$0xf]
    %v225 = vld [vmem:[#allocation8 + $0x2c] sm:$0xf]
    %v226 = vld [vmem:[#allocation8 + $0x30] sm:$0xf]
    %v227 = vld [vmem:[#allocation8 + $0x34] sm:$0xf]
    %v228 = vld [vmem:[#allocation8 + $0x38] sm:$0xf]
    %v229 = vld [vmem:[#allocation8 + $0x3c] sm:$0xf]
    %v230 = vld [vmem:[%s6] sm:$0x1]
    %v232 = vlaneseq
    %v233 = vshrl.u32 %v232, 7
    %v234 = vsub.s32 0, %v233
    %v235 = vrot.slane %v230, %v234
    %v253 = vunpack.c.l.b16 %v214
    %v254 = vunpack.c.l.b16 %v215
    %v255 = vunpack.c.l.b16 %v216
    %v256 = vunpack.c.l.b16 %v217
    %v257 = vunpack.c.l.b16 %v218
    %v258 = vunpack.c.l.b16 %v219
    %v259 = vunpack.c.l.b16 %v220
    %v260 = vunpack.c.l.b16 %v221
    %v261 = vunpack.c.l.b16 %v222
    %v262 = vunpack.c.l.b16 %v223
    %v263 = vunpack.c.l.b16 %v224
    %v264 = vunpack.c.l.b16 %v225
    %v265 = vunpack.c.l.b16 %v226
    %v266 = vunpack.c.l.b16 %v227
    %v267 = vunpack.c.l.b16 %v228
    %v268 = vunpack.c.l.b16 %v229
    %v269 = vpack.c.b16 %v254, %v253
    %v270 = vpack.c.b16 %v256, %v255
    %v271 = vpack.c.b16 %v258, %v257
    %v272 = vpack.c.b16 %v260, %v259
    %v273 = vpack.c.b16 %v262, %v261
    %v274 = vpack.c.b16 %v264, %v263
    %v275 = vpack.c.b16 %v266, %v265
    %v276 = vpack.c.b16 %v268, %v267
    %285 = vmatprep.subr.bf16.mxu0 0
    %286 = vmatpush1.bf16.msra.mxu0 %v276
    %287 = vmatprep.subr.bf16.mxu0 0
    %288 = vmatpush1.bf16.msra.mxu0 %v275
    %289 = vmatprep.subr.bf16.mxu0 0
    %290 = vmatpush1.bf16.msra.mxu0 %v274
    %291 = vmatprep.subr.bf16.mxu0 0
    %292 = vmatpush1.bf16.msra.mxu0 %v273
    %293 = vmatprep.subr.bf16.mxu0 0
    %294 = vmatpush1.bf16.msra.mxu0 %v272
    %295 = vmatprep.subr.bf16.mxu0 0
    %296 = vmatpush1.bf16.msra.mxu0 %v271
    %297 = vmatprep.subr.bf16.mxu0 0
    %298 = vmatpush1.bf16.msra.mxu0 %v270
    %299 = vmatprep.subr.bf16.mxu0 0
    %300 = vmatpush1.bf16.msra.mxu0 %v269
    %301 = vmatprep.subr.bf16.mxu0 0
    %302 = vmatpush2.bf16.msra.mxu0 0
    %303 = vmatprep.subr.bf16.mxu0 0
    %304 = vmatpush2.bf16.msra.mxu0 0
    %305 = vmatprep.subr.bf16.mxu0 0
    %306 = vmatpush2.bf16.msra.mxu0 0
    %307 = vmatprep.subr.bf16.mxu0 0
    %308 = vmatpush2.bf16.msra.mxu0 0
    %309 = vmatprep.subr.bf16.mxu0 0
    %310 = vmatpush2.bf16.msra.mxu0 0
    %311 = vmatprep.subr.bf16.mxu0 0
    %312 = vmatpush2.bf16.msra.mxu0 0
    %313 = vmatprep.subr.bf16.mxu0 0
    %314 = vmatpush2.bf16.msra.mxu0 0
    %315 = vmatprep.subr.bf16.mxu0 0
    %316 = vmatpush2.bf16.msra.mxu0 0
    %317 = vmatprep.mubr.bf16.mxu0 0
    %318 = vmatmul.mubr.bf16.gmra.mxu0 %v213
    %v319 = vpop.f32.mrf.mxu0
    %v320 = vadd.f32 %v235, %v319
    %v321 = vpop.f32.mrf.mxu0
    %v322 = vpop.f32.mrf.mxu0
    %v323 = vpop.f32.mrf.mxu0
    %324 = vdwg.mxu0
    %v325 = vmax.f32 %v320, 0.0
    %v326 = vpack.c.bf16 %v325, %v325
    %v327 = vld [vmem:[#allocation10] sm:$0xf]
    %v328 = vld [vmem:[#allocation10 + $0x4] sm:$0xf]
    %v329 = vld [vmem:[#allocation10 + $0x8] sm:$0xf]
    %v330 = vld [vmem:[#allocation10 + $0xc] sm:$0xf]
    %v331 = vld [vmem:[#allocation10 + $0x10] sm:$0xf]
    %v332 = vld [vmem:[#allocation10 + $0x14] sm:$0xf]
    %v333 = vld [vmem:[#allocation10 + $0x18] sm:$0xf]
    %v334 = vld [vmem:[#allocation10 + $0x1c] sm:$0xf]
    %v335 = vld [vmem:[#allocation10 + $0x20] sm:$0xf]
    %v336 = vld [vmem:[#allocation10 + $0x24] sm:$0xf]
    %v337 = vld [vmem:[#allocation10 + $0x28] sm:$0xf]
    %v338 = vld [vmem:[#allocation10 + $0x2c] sm:$0xf]
    %v339 = vld [vmem:[#allocation10 + $0x30] sm:$0xf]
    %v340 = vld [vmem:[#allocation10 + $0x34] sm:$0xf]
    %v341 = vld [vmem:[#allocation10 + $0x38] sm:$0xf]
    %v342 = vld [vmem:[#allocation10 + $0x3c] sm:$0xf]
    %v343 = vld [vmem:[%s8] sm:$0x1]
    %v345 = vlaneseq
    %v346 = vshrl.u32 %v345, 7
    %v347 = vsub.s32 0, %v346
    %v348 = vrot.slane %v343, %v347
    %v366 = vunpack.c.l.b16 %v327
    %v367 = vunpack.c.l.b16 %v328
    %v368 = vunpack.c.l.b16 %v329
    %v369 = vunpack.c.l.b16 %v330
    %v370 = vunpack.c.l.b16 %v331
    %v371 = vunpack.c.l.b16 %v332
    %v372 = vunpack.c.l.b16 %v333
    %v373 = vunpack.c.l.b16 %v334
    %v374 = vunpack.c.l.b16 %v335
    %v375 = vunpack.c.l.b16 %v336
    %v376 = vunpack.c.l.b16 %v337
    %v377 = vunpack.c.l.b16 %v338
    %v378 = vunpack.c.l.b16 %v339
    %v379 = vunpack.c.l.b16 %v340
    %v380 = vunpack.c.l.b16 %v341
    %v381 = vunpack.c.l.b16 %v342
    %v382 = vpack.c.b16 %v367, %v366
    %v383 = vpack.c.b16 %v369, %v368
    %v384 = vpack.c.b16 %v371, %v370
    %v385 = vpack.c.b16 %v373, %v372
    %v386 = vpack.c.b16 %v375, %v374
    %v387 = vpack.c.b16 %v377, %v376
    %v388 = vpack.c.b16 %v379, %v378
    %v389 = vpack.c.b16 %v381, %v380
    %398 = vmatprep.subr.bf16.mxu0 0
    %399 = vmatpush1.bf16.msra.mxu0 %v389
    %400 = vmatprep.subr.bf16.mxu0 0
    %401 = vmatpush1.bf16.msra.mxu0 %v388
    %402 = vmatprep.subr.bf16.mxu0 0
    %403 = vmatpush1.bf16.msra.mxu0 %v387
    %404 = vmatprep.subr.bf16.mxu0 0
    %405 = vmatpush1.bf16.msra.mxu0 %v386
    %406 = vmatprep.subr.bf16.mxu0 0
    %407 = vmatpush1.bf16.msra.mxu0 %v385
    %408 = vmatprep.subr.bf16.mxu0 0
    %409 = vmatpush1.bf16.msra.mxu0 %v384
    %410 = vmatprep.subr.bf16.mxu0 0
    %411 = vmatpush1.bf16.msra.mxu0 %v383
    %412 = vmatprep.subr.bf16.mxu0 0
    %413 = vmatpush1.bf16.msra.mxu0 %v382
    %414 = vmatprep.subr.bf16.mxu0 0
    %415 = vmatpush2.bf16.msra.mxu0 0
    %416 = vmatprep.subr.bf16.mxu0 0
    %417 = vmatpush2.bf16.msra.mxu0 0
    %418 = vmatprep.subr.bf16.mxu0 0
    %419 = vmatpush2.bf16.msra.mxu0 0
    %420 = vmatprep.subr.bf16.mxu0 0
    %421 = vmatpush2.bf16.msra.mxu0 0
    %422 = vmatprep.subr.bf16.mxu0 0
    %423 = vmatpush2.bf16.msra.mxu0 0
    %424 = vmatprep.subr.bf16.mxu0 0
    %425 = vmatpush2.bf16.msra.mxu0 0
    %426 = vmatprep.subr.bf16.mxu0 0
    %427 = vmatpush2.bf16.msra.mxu0 0
    %428 = vmatprep.subr.bf16.mxu0 0
    %429 = vmatpush2.bf16.msra.mxu0 0
    %430 = vmatprep.mubr.bf16.mxu0 0
    %431 = vmatmul.mubr.bf16.gmra.mxu0 %v326
    %v432 = vpop.f32.mrf.mxu0
    %v433 = vadd.f32 %v348, %v432
    %v434 = vpop.f32.mrf.mxu0
    %v435 = vpop.f32.mrf.mxu0
    %v436 = vpop.f32.mrf.mxu0
    %437 = vdwg.mxu0
    %438 = vst.msk [vmem:[#allocation11] sm:$0xff] %vm160, %v433
    %440 = vrot.lane.b32.xlu0 %v433, 112
    %v441 = vpop.permute.xlu0 %440
    %443 = vst.msk [vmem:[#allocation12] sm:$0xff] %vm160, %v441
    // Predicated region
    $region58: #{tpu_custom_call.1} parent=1 // pred_check
      _
    $region59: #{tpu_custom_call.1} parent=1 // pred_check_branch
      %445 = sbr.rel (0) target = $region61
    $region60: #{tpu_custom_call.1} parent=1 // pred_region
      %s447 = ssub.s32 128, 128
      %448 = vsyncadd [#allocation4], %s447
      %s450 = sshll.u32 [#allocation11], 4
      %s451 = int_to_ptr.vmem [resolvable:$true] %s450
      %453 = dma.vmem_to_hbm [thread:$0]  %s451, 128, %s9, [#allocation4]
    $region61: #{tpu_custom_call.1} parent=1 // pred_fallthru
      _
    // Predicated region
    $region62: #{tpu_custom_call.1} parent=1 // pred_check
      _
    $region63: #{tpu_custom_call.1} parent=1 // pred_check_branch
      %455 = sbr.rel (0) target = $region65
    $region64: #{tpu_custom_call.1} parent=1 // pred_region
      %s457 = ssub.s32 128, 128
      %458 = vsyncadd [#allocation13], %s457
      %s460 = sshll.u32 [#allocation12], 4
      %s461 = int_to_ptr.vmem [resolvable:$true] %s460
      %463 = dma.vmem_to_hbm [thread:$0]  %s461, 128, %s10, [#allocation13]
    $region65: #{tpu_custom_call.1} parent=1 // pred_fallthru
      _
    // Predicated region
    $region66: #{tpu_custom_call.1} parent=1 // pred_check
      _
    $region67: #{tpu_custom_call.1} parent=1 // pred_check_branch
      %465 = sbr.rel (0) target = $region69
    $region68: #{tpu_custom_call.1} parent=1 // pred_region
      %466 = dma.done [#allocation4], 128
    $region69: #{tpu_custom_call.1} parent=1 // pred_fallthru
      _
    // Predicated region
    $region70: #{tpu_custom_call.1} parent=1 // pred_check
      _
    $region71: #{tpu_custom_call.1} parent=1 // pred_check_branch
      %468 = sbr.rel (0) target = $region73
    $region72: #{tpu_custom_call.1} parent=1 // pred_region
      %469 = dma.done [#allocation13], 128
    $region73: #{tpu_custom_call.1} parent=1 // pred_fallthru
      _
    %470 = vsyncpa [#allocation3], 1
    %471 = vsyncpa [#allocation6], 1
    %472 = vsyncpa [#allocation9], 1
    %473 = vsyncpa [#allocation4], 1
    %474 = vsyncpa [#allocation13], 1

</llo_original>
